<compile_context>
chip_gen: v7x
topology: tpu7x:2x2x1
jax: 0.10.0
libtpu: 0.0.40
codegen_flags: <defaults>
</compile_context>

<pallas_src>
import functools

import jax
import jax.numpy as jnp
from jax.experimental import pallas as pl
from jax.experimental.pallas import tpu as pltpu

EPS = 1e-5  # nn.LayerNorm default


def _round_up(x, m):
    return ((x + m - 1) // m) * m


def _pick_tile_m(M, cap=512):
    """Row-tile size: multiple of 16, big MXU slabs, low padding waste."""
    if M <= 256:
        return _round_up(max(M, 8), 16)
    cands = [c for c in (512, 384, 256, 128, 64) if c <= cap]
    ok = [c for c in cands if (_round_up(M, c) - M) / _round_up(M, c) <= 0.125]
    if ok:
        return max(ok)
    return min(cands, key=lambda c: (_round_up(M, c) - M, -c))


def _vmem_budget_bytes():
    """Generation-aware scoped-VMEM cap (v7x: 64 MiB/TC; v5e/v6e: 128 MiB)."""
    try:
        cap = pltpu.get_tpu_info().vmem_capacity_bytes
    except Exception:  # not on TPU / query unavailable -> conservative default
        cap = 128 * 1024 * 1024
    if cap <= 64 * 1024 * 1024:
        return 40 * 1024 * 1024
    return 48 * 1024 * 1024


def _layernorm_f32(x_f32, gamma_f32, beta_f32, inv_d):
    # Single pass over the last axis; padded columns are zero so sums are exact.
    s1 = jnp.sum(x_f32, axis=-1, keepdims=True)
    s2 = jnp.sum(x_f32 * x_f32, axis=-1, keepdims=True)
    mean = s1 * inv_d
    var = jnp.maximum(s2 * inv_d - mean * mean, 0.0)
    inv = jax.lax.rsqrt(var + EPS)
    # gamma/beta are zero beyond the true dim -> padded cols stay exactly 0.
    return (x_f32 - mean) * inv * gamma_f32 + beta_f32


def _prenorm_fullw_kernel(x_ref, g_ref, b_ref, w_ref, bias_ref, o_ref, *, inv_d):
    # Path A: W (Dp, DOp) fully resident; 1-D row grid; LN once per row tile.
    normed = _layernorm_f32(x_ref[...].astype(jnp.float32),
                            g_ref[...].astype(jnp.float32),
                            b_ref[...].astype(jnp.float32), inv_d)
    y = jnp.dot(normed.astype(w_ref.dtype), w_ref[...],
                preferred_element_type=jnp.float32)
    o_ref[...] = (y + bias_ref[...].astype(jnp.float32)).astype(o_ref.dtype)


def _prenorm_coltile_kernel(x_ref, g_ref, b_ref, w_ref, bias_ref, o_ref,
                            normed_ref, *, inv_d):
    # Path B: W column-tiled.  LayerNorm is computed only for j == 0 and the
    # result is cached in a VMEM scratch reused by every output-column tile
    # (j axis marked "arbitrary" -> no megacore sharding of the cached state).
    @pl.when(pl.program_id(1) == 0)
    def _():
        normed = _layernorm_f32(x_ref[...].astype(jnp.float32),
                                g_ref[...].astype(jnp.float32),
                                b_ref[...].astype(jnp.float32), inv_d)
        normed_ref[...] = normed.astype(normed_ref.dtype)

    y = jnp.dot(normed_ref[...], w_ref[...], preferred_element_type=jnp.float32)
    o_ref[...] = (y + bias_ref[...].astype(jnp.float32)).astype(o_ref.dtype)


def prepare_params(gamma, beta, w, b, *, mm_dtype=jnp.bfloat16):
    """Pad/cast LayerNorm + Linear parameters once.  Call at init, not per step."""
    D, DO = w.shape
    Dp = _round_up(D, 128)
    DOp = _round_up(DO, 128)
    gp = gamma.reshape(1, D).astype(jnp.float32)
    btp = beta.reshape(1, D).astype(jnp.float32)
    bp = b.reshape(1, DO).astype(jnp.float32)
    wp = w.astype(mm_dtype)  # bf16 MXU path on all gens, f32 accumulation
    if Dp != D:
        gp = jnp.pad(gp, ((0, 0), (0, Dp - D)))
        btp = jnp.pad(btp, ((0, 0), (0, Dp - D)))
        wp = jnp.pad(wp, ((0, Dp - D), (0, 0)))
    if DOp != DO:
        bp = jnp.pad(bp, ((0, 0), (0, DOp - DO)))
        wp = jnp.pad(wp, ((0, 0), (0, DOp - DO)))
    return {"gamma": gp, "beta": btp, "w": wp, "bias": bp, "dim": D, "dim_out": DO}


def prenorm_linear(x, params, *, max_tile_m=512, max_tile_n=512,
                   force_column_tiled=False):
    """x: (..., D) -> (..., DO); fused LayerNorm(D) + Linear(D, DO)."""
    D, DO = params["dim"], params["dim_out"]
    gp, btp, wp, bp = params["gamma"], params["beta"], params["w"], params["bias"]
    Dp, DOp = wp.shape
    lead = x.shape[:-1]
    assert x.shape[-1] == D
    M = 1
    for s in lead:
        M *= s

    tm = _pick_tile_m(M, max_tile_m)
    budget = _vmem_budget_bytes()
    x_size = jnp.dtype(x.dtype).itemsize
    mm_size = jnp.dtype(wp.dtype).itemsize

    def est(tm_, tn_, cached):
        e = (2 * tm_ * Dp * x_size          # x tile (double-buffered)
             + 2 * Dp * tn_ * mm_size       # W block (budget 2x)
             + 2 * tm_ * tn_ * x_size       # out tile (double-buffered)
             + tm_ * Dp * 4 + tm_ * tn_ * 4 # f32 intermediates headroom
             + 8 * (Dp + tn_) * 4)          # gamma / beta / bias
        if cached:
            e += tm_ * Dp * mm_size         # normed cache scratch
        return e

    full_w = (not force_column_tiled) and est(tm, DOp, False) <= budget
    if full_w:
        tn, cached = DOp, False
    else:
        cached = True
        tn = 128                            # 128 always divides DOp
        for cand in (512, 384, 256, 128):
            if cand <= max_tile_n and DOp % cand == 0 and est(tm, cand, True) <= budget:
                tn = cand
                break
        while est(tm, tn, True) > budget and tm > 64:
            tm = max(64, _round_up(tm // 2, 16))

    Mp = _round_up(M, tm)
    x2 = x.reshape(M, D)
    if Mp != M or Dp != D:
        x2 = jnp.pad(x2, ((0, Mp - M), (0, Dp - D)))

    vmem_limit = int(min(budget, max(int(est(tm, tn, cached) * 1.25),
                                     16 * 1024 * 1024)))

    if full_w:
        out = pl.pallas_call(
            functools.partial(_prenorm_fullw_kernel, inv_d=1.0 / D),
            out_shape=jax.ShapeDtypeStruct((Mp, DOp), x.dtype),
            grid_spec=pltpu.PrefetchScalarGridSpec(
                num_scalar_prefetch=0,
                grid=(Mp // tm,),
                in_specs=[
                    pl.BlockSpec((tm, Dp),   lambda i: (i, 0)),  # x rows
                    pl.BlockSpec((1, Dp),    lambda i: (0, 0)),  # gamma
                    pl.BlockSpec((1, Dp),    lambda i: (0, 0)),  # beta
                    pl.BlockSpec((Dp, DOp),  lambda i: (0, 0)),  # W (resident)
                    pl.BlockSpec((1, DOp),   lambda i: (0, 0)),  # bias
                ],
                out_specs=pl.BlockSpec((tm, DOp), lambda i: (i, 0)),
            ),
            compiler_params=pltpu.CompilerParams(
                dimension_semantics=("parallel",),
                vmem_limit_bytes=vmem_limit,
            ),
        )(x2, gp, btp, wp, bp)
    else:
        out = pl.pallas_call(
            functools.partial(_prenorm_coltile_kernel, inv_d=1.0 / D),
            out_shape=jax.ShapeDtypeStruct((Mp, DOp), x.dtype),
            grid_spec=pltpu.PrefetchScalarGridSpec(
                num_scalar_prefetch=0,
                grid=(Mp // tm, DOp // tn),
                in_specs=[
                    pl.BlockSpec((tm, Dp),  lambda i, j: (i, 0)),  # x rows
                    pl.BlockSpec((1, Dp),   lambda i, j: (0, 0)),  # gamma
                    pl.BlockSpec((1, Dp),   lambda i, j: (0, 0)),  # beta
                    pl.BlockSpec((Dp, tn),  lambda i, j: (0, j)),  # W column tile
                    pl.BlockSpec((1, tn),   lambda i, j: (0, j)),  # bias tile
                ],
                out_specs=pl.BlockSpec((tm, tn), lambda i, j: (i, j)),
                scratch_shapes=[pltpu.VMEM((tm, Dp), wp.dtype)],   # normed cache
            ),
            compiler_params=pltpu.CompilerParams(
                # j must be "arbitrary": the normed cache is carried across j.
                dimension_semantics=("parallel", "arbitrary"),
                vmem_limit_bytes=vmem_limit,
            ),
        )(x2, gp, btp, wp, bp)

    if Mp != M or DOp != DO:
        out = out[:M, :DO]
    return out.reshape(*lead, DO)


def reference(x, gamma, beta, w, b):
    xf = x.astype(jnp.float32)
    mean = jnp.mean(xf, axis=-1, keepdims=True)
    var = jnp.mean((xf - mean) ** 2, axis=-1, keepdims=True)
    normed = (xf - mean) * jax.lax.rsqrt(var + EPS)
    normed = normed * gamma.reshape(-1) + beta.reshape(-1)
    return normed @ w.astype(jnp.float32) + b.reshape(-1)


def _make_inputs(key, B, N, D, DO, dtype=jnp.float32):
    kx, kw, kb = jax.random.split(key, 3)
    x = jax.random.normal(kx, (B, N, D), dtype=dtype)
    gamma = jnp.ones((D,), dtype=dtype)        # PyTorch LayerNorm init
    beta = jnp.zeros((D,), dtype=dtype)
    bound = 1.0 / (D ** 0.5)
    w = jax.random.uniform(kw, (D, DO), minval=-bound, maxval=bound, dtype=dtype)
    b = jax.random.uniform(kb, (DO,), minval=-bound, maxval=bound, dtype=dtype)
    return x, gamma, beta, w, b


if __name__ == "__main__":
    # Matmul runs in bf16 (f32 accumulation) -> looser tolerance vs f32 reference.
    ATOL = RTOL = 2e-2

    # Small shapes consistent with the module: (batch, seq, dim) = (2, 8, 32).
    x, gamma, beta, w, b = _make_inputs(jax.random.PRNGKey(0), 2, 8, 32, 32)
    params = prepare_params(gamma, beta, w, b)           # pad/cast once, at init
    out = jax.block_until_ready(prenorm_linear(x, params))
    ref = reference(x, gamma, beta, w, b)
    assert out.shape == (2, 8, 32)
    assert jnp.allclose(out, ref, atol=ATOL, rtol=RTOL), "mismatch vs reference"

    # Ragged shapes (row / feature / output-dim padding paths, ViT-like N).
    x2, g2, be2, w2, b2 = _make_inputs(jax.random.PRNGKey(1), 2, 13, 40, 72)
    params2 = prepare_params(g2, be2, w2, b2)
    out2 = jax.block_until_ready(prenorm_linear(x2, params2))
    ref2 = reference(x2, g2, be2, w2, b2)
    assert out2.shape == (2, 13, 72)
    assert jnp.allclose(out2, ref2, atol=ATOL, rtol=RTOL), "ragged mismatch"

    # Exercise the column-tiled (cached-LayerNorm) path explicitly.
    x3, g3, be3, w3, b3 = _make_inputs(jax.random.PRNGKey(2), 2, 13, 40, 256)
    params3 = prepare_params(g3, be3, w3, b3)
    out3 = jax.block_until_ready(
        prenorm_linear(x3, params3, max_tile_n=128, force_column_tiled=True))
    ref3 = reference(x3, g3, be3, w3, b3)
    assert out3.shape == (2, 13, 256)
    assert jnp.allclose(out3, ref3, atol=ATOL, rtol=RTOL), "coltile mismatch"

    print("KERNEL_OK")
</pallas_src>

<mosaic_0001>
module attributes {stable_mosaic.version = 11 : i64} {
  func.func @_prenorm_fullw_kernel(%arg0: i32, %arg1: memref<16x128xf32, #tpu.memory_space<vmem>>, %arg2: memref<1x128xf32, #tpu.memory_space<vmem>>, %arg3: memref<1x128xf32, #tpu.memory_space<vmem>>, %arg4: memref<128x128xbf16, #tpu.memory_space<vmem>>, %arg5: memref<1x128xf32, #tpu.memory_space<vmem>>, %arg6: memref<16x128xf32, #tpu.memory_space<vmem>>) attributes {dimension_semantics = [#tpu.dimension_semantics<parallel>], iteration_bounds = array<i64: 1>, scalar_prefetch = 0 : i64, scratch_operands = 0 : i64, tpu.core_type = #tpu.core_type<tc>, window_params = [{transform_indices = @transform_0, window_bounds = array<i64: 16, 128>}, {pipeline_mode = #tpu.pipeline_mode<synchronous>, transform_indices = @transform_1, window_bounds = array<i64: 1, 128>}, {pipeline_mode = #tpu.pipeline_mode<synchronous>, transform_indices = @transform_2, window_bounds = array<i64: 1, 128>}, {pipeline_mode = #tpu.pipeline_mode<synchronous>, transform_indices = @transform_3, window_bounds = array<i64: 128, 128>}, {pipeline_mode = #tpu.pipeline_mode<synchronous>, transform_indices = @transform_4, window_bounds = array<i64: 1, 128>}, {transform_indices = @transform_5, window_bounds = array<i64: 16, 128>}]} {
    %c0 = arith.constant 0 : index
    %c0_0 = arith.constant 0 : index
    %0 = vector.load %arg1[%c0, %c0_0] : memref<16x128xf32, #tpu.memory_space<vmem>>, vector<16x128xf32>
    %c0_1 = arith.constant 0 : index
    %c0_2 = arith.constant 0 : index
    %1 = vector.load %arg2[%c0_1, %c0_2] : memref<1x128xf32, #tpu.memory_space<vmem>>, vector<1x128xf32>
    %c0_3 = arith.constant 0 : index
    %c0_4 = arith.constant 0 : index
    %2 = vector.load %arg3[%c0_3, %c0_4] : memref<1x128xf32, #tpu.memory_space<vmem>>, vector<1x128xf32>
    %cst = arith.constant dense<0.000000e+00> : vector<16xf32>
    %3 = vector.multi_reduction <add>, %0, %cst [1] : vector<16x128xf32> to vector<16xf32>
    %4 = vector.shape_cast %3 : vector<16xf32> to vector<16x1xf32>
    %5 = arith.mulf %0, %0 : vector<16x128xf32>
    %cst_5 = arith.constant dense<0.000000e+00> : vector<16xf32>
    %6 = vector.multi_reduction <add>, %5, %cst_5 [1] : vector<16x128xf32> to vector<16xf32>
    %7 = vector.shape_cast %6 : vector<16xf32> to vector<16x1xf32>
    %cst_6 = arith.constant 3.125000e-02 : f32
    %8 = vector.broadcast %cst_6 : f32 to vector<16x1xf32>
    %9 = arith.mulf %4, %8 : vector<16x1xf32>
    %cst_7 = arith.constant 3.125000e-02 : f32
    %10 = vector.broadcast %cst_7 : f32 to vector<16x1xf32>
    %11 = arith.mulf %7, %10 : vector<16x1xf32>
    %12 = arith.mulf %9, %9 : vector<16x1xf32>
    %13 = arith.subf %11, %12 : vector<16x1xf32>
    %cst_8 = arith.constant 0.000000e+00 : f32
    %14 = vector.broadcast %cst_8 : f32 to vector<16x1xf32>
    %15 = arith.maximumf %13, %14 : vector<16x1xf32>
    %cst_9 = arith.constant 9.99999974E-6 : f32
    %16 = vector.broadcast %cst_9 : f32 to vector<16x1xf32>
    %17 = arith.addf %15, %16 : vector<16x1xf32>
    %18 = math.rsqrt %17 : vector<16x1xf32>
    %19 = vector.broadcast %9 : vector<16x1xf32> to vector<16x128xf32>
    %20 = arith.subf %0, %19 : vector<16x128xf32>
    %21 = vector.broadcast %18 : vector<16x1xf32> to vector<16x128xf32>
    %22 = arith.mulf %20, %21 : vector<16x128xf32>
    %23 = vector.broadcast %1 : vector<1x128xf32> to vector<16x128xf32>
    %24 = arith.mulf %22, %23 : vector<16x128xf32>
    %25 = vector.broadcast %2 : vector<1x128xf32> to vector<16x128xf32>
    %26 = arith.addf %24, %25 : vector<16x128xf32>
    %27 = arith.truncf %26 : vector<16x128xf32> to vector<16x128xbf16>
    %c0_10 = arith.constant 0 : index
    %c0_11 = arith.constant 0 : index
    %28 = vector.load %arg4[%c0_10, %c0_11] : memref<128x128xbf16, #tpu.memory_space<vmem>>, vector<128x128xbf16>
    %cst_12 = arith.constant dense<0.000000e+00> : vector<16x128xf32>
    %29 = tpu.matmul %27, %28, %cst_12 {dimension_numbers = #tpu.dot_dimension_numbers<[1], [0], [0], [1], [0, 0, 1, 1], [], []>} : vector<16x128xbf16>, vector<128x128xbf16>, vector<16x128xf32> -> vector<16x128xf32>
    %c0_13 = arith.constant 0 : index
    %c0_14 = arith.constant 0 : index
    %30 = vector.load %arg5[%c0_13, %c0_14] : memref<1x128xf32, #tpu.memory_space<vmem>>, vector<1x128xf32>
    %31 = vector.broadcast %30 : vector<1x128xf32> to vector<16x128xf32>
    %32 = arith.addf %29, %31 : vector<16x128xf32>
    %c0_15 = arith.constant 0 : index
    %c0_16 = arith.constant 0 : index
    %33 = vector.load %arg6[%c0_15, %c0_16] : memref<16x128xf32, #tpu.memory_space<vmem>>, vector<16x128xf32>
    tpu.vector_store %arg6[%c0_15, %c0_16], %32 {strides = array<i32>} : memref<16x128xf32, #tpu.memory_space<vmem>>, vector<16x128xf32>,
    return
  }
  func.func @transform_0(%arg0: i32) -> (i32, i32) {
    %c0_i32 = arith.constant 0 : i32
    %c0_i32_0 = arith.constant 0 : i32
    return %arg0, %c0_i32 : i32, i32
  }
  func.func @transform_1(%arg0: i32) -> (i32, i32) {
    %c0_i32 = arith.constant 0 : i32
    %c0_i32_0 = arith.constant 0 : i32
    %c0_i32_1 = arith.constant 0 : i32
    return %c0_i32, %c0_i32_0 : i32, i32
  }
  func.func @transform_2(%arg0: i32) -> (i32, i32) {
    %c0_i32 = arith.constant 0 : i32
    %c0_i32_0 = arith.constant 0 : i32
    %c0_i32_1 = arith.constant 0 : i32
    return %c0_i32, %c0_i32_0 : i32, i32
  }
  func.func @transform_3(%arg0: i32) -> (i32, i32) {
    %c0_i32 = arith.constant 0 : i32
    %c0_i32_0 = arith.constant 0 : i32
    %c0_i32_1 = arith.constant 0 : i32
    return %c0_i32, %c0_i32_0 : i32, i32
  }
  func.func @transform_4(%arg0: i32) -> (i32, i32) {
    %c0_i32 = arith.constant 0 : i32
    %c0_i32_0 = arith.constant 0 : i32
    %c0_i32_1 = arith.constant 0 : i32
    return %c0_i32, %c0_i32_0 : i32, i32
  }
  func.func @transform_5(%arg0: i32) -> (i32, i32) {
    %c0_i32 = arith.constant 0 : i32
    %c0_i32_0 = arith.constant 0 : i32
    return %arg0, %c0_i32 : i32, i32
  }
}

</mosaic_0001>

<llo_original>
// kernel: tpu_custom_call.1
$region0: #{tpu_custom_call.1}
  #allocation0 [shape = 'u32[]', space=smem, size = 0x4, offset = 0x4, fixed_abs, tag = 'smem constant byte address 0x4 - core index']
  #allocation1 [shape = 'u32[144,128]{1,0:T(1,128)}', space=vmem, size = 0x12000, scoped, tag = 'internal scratch']
  %s0 = inlined_call_operand.hbm [shape: f32[16,128], index: 0, kind: input, shape index: {}]
  %s1 = inlined_call_operand.vmem [shape: f32[1,128], index: 1, kind: input, shape index: {}]
  %s2 = inlined_call_operand.vmem [shape: f32[1,128], index: 2, kind: input, shape index: {}]
  %s3 = inlined_call_operand.hbm [shape: bf16[128,128], index: 3, kind: input, shape index: {}]
  %s4 = inlined_call_operand.vmem [shape: f32[1,128], index: 4, kind: input, shape index: {}]
  %s5 = inlined_call_operand.hbm [shape: f32[16,128], index: 5, kind: output, shape index: {}]
  %s6 = sld [smem:[#allocation0]]
  $region38: #{tpu_custom_call.1} parent=0
    _
  %s8 = ssub.s32 1, %s6
  %s9 = scalar_select 0, %s8, %s6
  $region1: #{tpu_custom_call.1} parent=0
    #allocation2 [shape = 'u8[8192]{0}', space=vmem, size = 0x2000, scoped, tag = 'input window, operand 0, single buffered']
    #allocation3 [shape = 's32[1]{0}', space=sflag, size = 0x4, scoped, tag = 'scoped memory for tpu_custom_call.1']
    #allocation4 [shape = 's32[1]{0}', space=sflag, size = 0x4, scoped, tag = 'scoped memory for tpu_custom_call.1']
    #allocation5 [shape = 'u8[32768]{0}', space=vmem, size = 0x8000, scoped, tag = 'input window, operand 3, single buffered']
    #allocation6 [shape = 's32[1]{0}', space=sflag, size = 0x4, scoped, tag = 'scoped memory for tpu_custom_call.1']
    #allocation7 [shape = 'u8[8192]{0}', space=vmem, size = 0x2000, scoped, tag = 'output window, operand 0, single buffered']
    %10 = vsyncpa [#allocation3], 0
    %11 = vsyncpa [#allocation6], 0
    %12 = vsyncpa [#allocation4], 0
    // Predicated region
    $region2: #{tpu_custom_call.1} parent=1 // pred_check
      _
    $region3: #{tpu_custom_call.1} parent=1 // pred_check_branch
      %14 = sbr.rel (0) target = $region5
    $region4: #{tpu_custom_call.1} parent=1 // pred_region
      %s16 = ssub.s32 256, 256
      %17 = vsyncadd [#allocation3], %s16
      %s18 = sshll.u32 [#allocation2], 4
      %s19 = int_to_ptr.vmem [resolvable:$true] %s18
      %24 = dma.hbm_to_vmem [thread:$0]  %s0, 256, %s19, [#allocation3], 128, 128, 8
    $region5: #{tpu_custom_call.1} parent=1 // pred_fallthru
      _
    // Predicated region
    $region6: #{tpu_custom_call.1} parent=1 // pred_check
      _
    $region7: #{tpu_custom_call.1} parent=1 // pred_check_branch
      %26 = sbr.rel (0) target = $region9
    $region8: #{tpu_custom_call.1} parent=1 // pred_region
      _
    $region9: #{tpu_custom_call.1} parent=1 // pred_fallthru
      _
    // Predicated region
    $region10: #{tpu_custom_call.1} parent=1 // pred_check
      _
    $region11: #{tpu_custom_call.1} parent=1 // pred_check_branch
      %28 = sbr.rel (0) target = $region13
    $region12: #{tpu_custom_call.1} parent=1 // pred_region
      _
    $region13: #{tpu_custom_call.1} parent=1 // pred_fallthru
      _
    // Predicated region
    $region14: #{tpu_custom_call.1} parent=1 // pred_check
      _
    $region15: #{tpu_custom_call.1} parent=1 // pred_check_branch
      %30 = sbr.rel (0) target = $region17
    $region16: #{tpu_custom_call.1} parent=1 // pred_region
      %s32 = ssub.s32 1024, 1024
      %33 = vsyncadd [#allocation6], %s32
      %s34 = sshll.u32 [#allocation5], 4
      %s35 = int_to_ptr.vmem [resolvable:$true] %s34
      %40 = dma.hbm_to_vmem [thread:$0]  %s3, 1024, %s35, [#allocation6], 64, 64, 4
    $region17: #{tpu_custom_call.1} parent=1 // pred_fallthru
      _
    // Predicated region
    $region18: #{tpu_custom_call.1} parent=1 // pred_check
      _
    $region19: #{tpu_custom_call.1} parent=1 // pred_check_branch
      %42 = sbr.rel (0) target = $region21
    $region20: #{tpu_custom_call.1} parent=1 // pred_region
      _
    $region21: #{tpu_custom_call.1} parent=1 // pred_fallthru
      _
    // Predicated region
    $region22: #{tpu_custom_call.1} parent=1 // pred_check
      _
    $region23: #{tpu_custom_call.1} parent=1 // pred_check_branch
      %44 = sbr.rel (0) target = $region25
    $region24: #{tpu_custom_call.1} parent=1 // pred_region
      %45 = dma.done [#allocation3], 256
    $region25: #{tpu_custom_call.1} parent=1 // pred_fallthru
      _
    // Predicated region
    $region26: #{tpu_custom_call.1} parent=1 // pred_check
      _
    $region27: #{tpu_custom_call.1} parent=1 // pred_check_branch
      %47 = sbr.rel (0) target = $region29
    $region28: #{tpu_custom_call.1} parent=1 // pred_region
      %48 = dma.done [#allocation6], 1024
    $region29: #{tpu_custom_call.1} parent=1 // pred_fallthru
      _
    %v50 = vld [vmem:[#allocation2] sm:$0xff]
    %v51 = vld [vmem:[#allocation2 + $0x8] sm:$0xff]
    %v52 = vld [vmem:[%s1] sm:$0x1]
    %v53 = vld [vmem:[%s2] sm:$0x1]
    %54 = vadd.xlane.f32.xlu0 %v50
    %v55 = vpop.xlane.xlu0 %54
    %56 = vadd.xlane.f32.xlu0 %v51
    %v57 = vpop.xlane.xlu0 %56
    %v58 = vmul.f32 %v50, %v50
    %v59 = vmul.f32 %v51, %v51
    %60 = vadd.xlane.f32.xlu0 %v58
    %v61 = vpop.xlane.xlu0 %60
    %62 = vadd.xlane.f32.xlu0 %v59
    %v63 = vpop.xlane.xlu0 %62
    %v64 = vmul.f32 %v55, 0.03125
    %v65 = vmul.f32 %v57, 0.03125
    %v66 = vmul.f32 %v61, 0.03125
    %v67 = vmul.f32 %v63, 0.03125
    %v68 = vmul.f32 %v64, %v64
    %v69 = vmul.f32 %v65, %v65
    %v70 = vsub.f32 %v66, %v68
    %v71 = vsub.f32 %v67, %v69
    %v72 = vmax.f32 %v70, 0.0
    %v73 = vmax.f32 %v71, 0.0
    %v74 = vadd.f32 %v72, 1e-05
    %v75 = vadd.f32 %v73, 1e-05
    %v76 = vrsqrt.pop %v74
    %v77 = vrsqrt.pop %v75
    %v78 = vsub.f32 %v50, %v64
    %v79 = vsub.f32 %v51, %v65
    %v80 = vmul.f32 %v78, %v76
    %v81 = vmul.f32 %v79, %v77
    %v83 = vlaneseq
    %v84 = vshrl.u32 %v83, 7
    %v85 = vsub.s32 0, %v84
    %v86 = vrot.slane %v52, %v85
    %v88 = vmul.f32 %v80, %v86
    %v89 = vmul.f32 %v81, %v86
    %v91 = vlaneseq
    %v92 = vshrl.u32 %v91, 7
    %v93 = vsub.s32 0, %v92
    %v94 = vrot.slane %v53, %v93
    %v96 = vadd.f32 %v88, %v94
    %v97 = vadd.f32 %v89, %v94
    %v98 = vpack.c.bf16 %v97, %v96
    %v99 = vld [vmem:[#allocation5] sm:$0xf]
    %v100 = vld [vmem:[#allocation5 + $0x4] sm:$0xf]
    %v101 = vld [vmem:[#allocation5 + $0x8] sm:$0xf]
    %v102 = vld [vmem:[#allocation5 + $0xc] sm:$0xf]
    %v103 = vld [vmem:[#allocation5 + $0x10] sm:$0xf]
    %v104 = vld [vmem:[#allocation5 + $0x14] sm:$0xf]
    %v105 = vld [vmem:[#allocation5 + $0x18] sm:$0xf]
    %v106 = vld [vmem:[#allocation5 + $0x1c] sm:$0xf]
    %v107 = vld [vmem:[#allocation5 + $0x20] sm:$0xf]
    %v108 = vld [vmem:[#allocation5 + $0x24] sm:$0xf]
    %v109 = vld [vmem:[#allocation5 + $0x28] sm:$0xf]
    %v110 = vld [vmem:[#allocation5 + $0x2c] sm:$0xf]
    %v111 = vld [vmem:[#allocation5 + $0x30] sm:$0xf]
    %v112 = vld [vmem:[#allocation5 + $0x34] sm:$0xf]
    %v113 = vld [vmem:[#allocation5 + $0x38] sm:$0xf]
    %v114 = vld [vmem:[#allocation5 + $0x3c] sm:$0xf]
    %v115 = vld [vmem:[%s4] sm:$0x1]
    %v117 = vlaneseq
    %v118 = vshrl.u32 %v117, 7
    %v119 = vsub.s32 0, %v118
    %v120 = vrot.slane %v115, %v119
    %v138 = vunpack.c.l.b16 %v99
    %v139 = vunpack.c.l.b16 %v100
    %v140 = vunpack.c.l.b16 %v101
    %v141 = vunpack.c.l.b16 %v102
    %v142 = vunpack.c.l.b16 %v103
    %v143 = vunpack.c.l.b16 %v104
    %v144 = vunpack.c.l.b16 %v105
    %v145 = vunpack.c.l.b16 %v106
    %v146 = vunpack.c.l.b16 %v107
    %v147 = vunpack.c.l.b16 %v108
    %v148 = vunpack.c.l.b16 %v109
    %v149 = vunpack.c.l.b16 %v110
    %v150 = vunpack.c.l.b16 %v111
    %v151 = vunpack.c.l.b16 %v112
    %v152 = vunpack.c.l.b16 %v113
    %v153 = vunpack.c.l.b16 %v114
    %v154 = vpack.c.b16 %v139, %v138
    %v155 = vpack.c.b16 %v141, %v140
    %v156 = vpack.c.b16 %v143, %v142
    %v157 = vpack.c.b16 %v145, %v144
    %v158 = vpack.c.b16 %v147, %v146
    %v159 = vpack.c.b16 %v149, %v148
    %v160 = vpack.c.b16 %v151, %v150
    %v161 = vpack.c.b16 %v153, %v152
    %170 = vmatprep.subr.bf16.mxu0 0
    %171 = vmatpush1.bf16.msra.mxu0 %v154
    %172 = vmatprep.subr.bf16.mxu0 0
    %173 = vmatpush1.bf16.msra.mxu0 %v155
    %174 = vmatprep.subr.bf16.mxu0 0
    %175 = vmatpush1.bf16.msra.mxu0 %v156
    %176 = vmatprep.subr.bf16.mxu0 0
    %177 = vmatpush1.bf16.msra.mxu0 %v157
    %178 = vmatprep.subr.bf16.mxu0 0
    %179 = vmatpush1.bf16.msra.mxu0 %v158
    %180 = vmatprep.subr.bf16.mxu0 0
    %181 = vmatpush1.bf16.msra.mxu0 %v159
    %182 = vmatprep.subr.bf16.mxu0 0
    %183 = vmatpush1.bf16.msra.mxu0 %v160
    %184 = vmatprep.subr.bf16.mxu0 0
    %185 = vmatpush1.bf16.msra.mxu0 %v161
    %186 = vmatprep.subr.bf16.mxu0 0
    %187 = vmatpush1.bf16.msra.mxu0 0
    %188 = vmatprep.subr.bf16.mxu0 0
    %189 = vmatpush1.bf16.msra.mxu0 0
    %190 = vmatprep.subr.bf16.mxu0 0
    %191 = vmatpush1.bf16.msra.mxu0 0
    %192 = vmatprep.subr.bf16.mxu0 0
    %193 = vmatpush1.bf16.msra.mxu0 0
    %194 = vmatprep.subr.bf16.mxu0 0
    %195 = vmatpush1.bf16.msra.mxu0 0
    %196 = vmatprep.subr.bf16.mxu0 0
    %197 = vmatpush1.bf16.msra.mxu0 0
    %198 = vmatprep.subr.bf16.mxu0 0
    %199 = vmatpush1.bf16.msra.mxu0 0
    %200 = vmatprep.subr.bf16.mxu0 0
    %201 = vmatpush1.bf16.msra.mxu0 0
    %202 = vmatprep.mubr.bf16.mxu0 0
    %203 = vmatmul.mubr.bf16.gmra.mrb[0].mxu0 %v98
    %v204 = vpop.f32.mrb[0].mxu0
    %v205 = vadd.f32 %v120, %v204
    %v206 = vpop.f32.mrb[0].mxu0
    %v207 = vpop.f32.mrb[0].mxu0
    %v208 = vadd.f32 %v120, %v207
    %v209 = vpop.f32.mrb[0].mxu0
    %210 = vdwg.mxu0
    %211 = vst [vmem:[#allocation7] sm:$0xff] %v205
    %212 = vst [vmem:[#allocation7 + $0x8] sm:$0xff] %v208
    // Predicated region
    $region30: #{tpu_custom_call.1} parent=1 // pred_check
      _
    $region31: #{tpu_custom_call.1} parent=1 // pred_check_branch
      %214 = sbr.rel (0) target = $region33
    $region32: #{tpu_custom_call.1} parent=1 // pred_region
      %s216 = ssub.s32 256, 256
      %217 = vsyncadd [#allocation4], %s216
      %s218 = sshll.u32 [#allocation7], 4
      %s219 = int_to_ptr.vmem [resolvable:$true] %s218
      %224 = dma.vmem_to_hbm [thread:$0]  %s219, 256, %s5, [#allocation4], 128, 128, 8
    $region33: #{tpu_custom_call.1} parent=1 // pred_fallthru
      _
    // Predicated region
    $region34: #{tpu_custom_call.1} parent=1 // pred_check
      _
    $region35: #{tpu_custom_call.1} parent=1 // pred_check_branch
      %226 = sbr.rel (0) target = $region37
    $region36: #{tpu_custom_call.1} parent=1 // pred_region
      %227 = dma.done [#allocation4], 256
    $region37: #{tpu_custom_call.1} parent=1 // pred_fallthru
      _
    %228 = vsyncpa [#allocation3], 1
    %229 = vsyncpa [#allocation6], 1
    %230 = vsyncpa [#allocation4], 1

</llo_original>
